<compile_context>
chip_gen: v6e
topology: v6e:2x2x1
jax: 0.10.0
libtpu: 0.0.40
codegen_flags: <defaults>
</compile_context>

<pallas_src>
import functools

import jax
import jax.numpy as jnp
from jax.experimental import pallas as pl
from jax.experimental.pallas import tpu as pltpu

NEG_SLOPE = 0.01  # nn.LeakyReLU default negative_slope


def _leaky_relu(x):
    return jnp.where(x > 0, x, NEG_SLOPE * x)


def _round_up(n, m):
    return ((n + m - 1) // m) * m


def _pad_to(a, shape):
    pads = [(0, s - d) for d, s in zip(a.shape, shape)]
    return jnp.pad(a, pads)


def mlp_kernel(x_ref, w1_ref, b1_ref, w2_ref, b2_ref, w3_ref, b3_ref, o_ref,
               *, num_classes):
    x = x_ref[...]  # bf16 [TB, K_pad]

    # fc1 + bias (f32) + LeakyReLU  (Dropout is identity in eval mode)
    h = jnp.dot(x, w1_ref[...], preferred_element_type=jnp.float32) + b1_ref[...]
    h = _leaky_relu(h).astype(jnp.bfloat16)

    # fc2 + bias + LeakyReLU
    h = jnp.dot(h, w2_ref[...], preferred_element_type=jnp.float32) + b2_ref[...]
    h = _leaky_relu(h).astype(jnp.bfloat16)

    # fc3 -> logits (lane-padded to C_pad); mask padded class lanes before softmax
    logits = jnp.dot(h, w3_ref[...], preferred_element_type=jnp.float32) + b3_ref[...]
    col = jax.lax.broadcasted_iota(jnp.int32, logits.shape, 1)
    logits = jnp.where(col < num_classes, logits, -jnp.inf)

    # softmax over classes (f32); exact reciprocal on the EUP (it has slack)
    m = jnp.max(logits, axis=1, keepdims=True)
    e = jnp.exp(logits - m)
    inv = pl.reciprocal(jnp.sum(e, axis=1, keepdims=True), approx=False)
    o_ref[...] = (e * inv).astype(o_ref.dtype)


def mlp_forward(x, params):
    """x: any shape [B, ...]; flattened from dim 1 (matches torch.flatten(x, 1))."""
    w1, b1, w2, b2, w3, b3 = params
    B = x.shape[0]
    x2d = jnp.reshape(x, (B, -1)).astype(jnp.float32)
    F = x2d.shape[1]
    H = w1.shape[1]
    C = w3.shape[1]

    # Lane/MXU-aligned padded feature sizes (zero padding is exact for matmul + bias).
    K_pad = _round_up(F, 128)
    H_pad = _round_up(H, 128)
    C_pad = _round_up(C, 128)

    # Batch tile: big (up to 1024 rows) for HBM efficiency, multiple of 16 for bf16
    # sublane packing, and ~B/4 so v7x's 2 TensorCores both get grid steps at large B.
    TB = max(16, min(1024, _round_up(pl.cdiv(B, 4), 16)))
    grid = (pl.cdiv(B, TB),)  # ragged last block: OOB rows undefined in / masked out

    # Only the feature dim of x is padded (single fused cast+pad pass); batch is NOT padded.
    xp = _pad_to(x2d.astype(jnp.bfloat16), (B, K_pad))
    w1p = _pad_to(w1.astype(jnp.float32), (K_pad, H_pad)).astype(jnp.bfloat16)
    w2p = _pad_to(w2.astype(jnp.float32), (H_pad, H_pad)).astype(jnp.bfloat16)
    w3p = _pad_to(w3.astype(jnp.float32), (H_pad, C_pad)).astype(jnp.bfloat16)
    b1p = _pad_to(b1.astype(jnp.float32), (1, H_pad))
    b2p = _pad_to(b2.astype(jnp.float32), (1, H_pad))
    b3p = _pad_to(b3.astype(jnp.float32), (1, C_pad))

    const = lambda i: (0, 0)  # weights/biases stay resident across batch tiles

    bytes_accessed = (
        xp.size * 2 + w1p.size * 2 + w2p.size * 2 + w3p.size * 2
        + b1p.size * 4 + b2p.size * 4 + b3p.size * 4 + B * C_pad * 2
    )
    cost = pl.CostEstimate(
        flops=2 * B * (K_pad * H_pad + H_pad * H_pad + H_pad * C_pad),
        transcendentals=B * C_pad,
        bytes_accessed=bytes_accessed,
    )

    out_padded = pl.pallas_call(
        functools.partial(mlp_kernel, num_classes=C),
        out_shape=jax.ShapeDtypeStruct((B, C_pad), jnp.bfloat16),
        grid=grid,
        in_specs=[
            pl.BlockSpec((TB, K_pad), lambda i: (i, 0)),
            pl.BlockSpec((K_pad, H_pad), const),
            pl.BlockSpec((1, H_pad), const),
            pl.BlockSpec((H_pad, H_pad), const),
            pl.BlockSpec((1, H_pad), const),
            pl.BlockSpec((H_pad, C_pad), const),
            pl.BlockSpec((1, C_pad), const),
        ],
        out_specs=pl.BlockSpec((TB, C_pad), lambda i: (i, 0)),
        compiler_params=pltpu.CompilerParams(
            dimension_semantics=("parallel",),
            # Modest limit: fits easily even with TB=1024 double-buffered, and stays
            # well inside v7x's 64 MiB physical VMEM.
            vmem_limit_bytes=32 * 1024 * 1024,
        ),
        cost_estimate=cost,
    )(xp, w1p, b1p, w2p, b2p, w3p, b3p)

    return out_padded[:, :C]


def init_params(key, in_channel=43, hidden=200, num_classes=2):
    ks = jax.random.split(key, 6)

    # PyTorch nn.Linear default init: U(-1/sqrt(fan_in), 1/sqrt(fan_in))
    def lin(kw, kb, fan_in, fan_out):
        bound = 1.0 / jnp.sqrt(jnp.float32(fan_in))
        # stored already transposed: [in, out]; bias as [1, out] for broadcasting
        w = jax.random.uniform(kw, (fan_in, fan_out), jnp.float32, -bound, bound)
        b = jax.random.uniform(kb, (1, fan_out), jnp.float32, -bound, bound)
        return w, b

    w1, b1 = lin(ks[0], ks[1], in_channel, hidden)
    w2, b2 = lin(ks[2], ks[3], hidden, hidden)
    w3, b3 = lin(ks[4], ks[5], hidden, num_classes)
    return (w1, b1, w2, b2, w3, b3)


def mlp_reference(x, params):
    """Pure-JAX f32 reference for correctness checking."""
    w1, b1, w2, b2, w3, b3 = params
    h = jnp.reshape(x, (x.shape[0], -1)).astype(jnp.float32)
    h = _leaky_relu(h @ w1 + b1)
    h = _leaky_relu(h @ w2 + b2)
    logits = h @ w3 + b3
    return jax.nn.softmax(logits, axis=1)


if __name__ == "__main__":
    key = jax.random.PRNGKey(0)
    kx, kp = jax.random.split(key)

    B, in_channel, num_classes = 2, 43, 2
    x = jax.random.normal(kx, (B, in_channel), dtype=jnp.float32)
    params = init_params(kp, in_channel=in_channel, hidden=200, num_classes=num_classes)

    out = mlp_forward(x, params)
    out = jax.block_until_ready(out)

    assert out.shape == (B, num_classes)
    out_f32 = out.astype(jnp.float32)
    # softmax rows sum to ~1 (bf16 output => loose tolerance)
    assert bool(jnp.allclose(jnp.sum(out_f32, axis=1), 1.0, atol=2e-2))
    # matches f32 reference within bf16-matmul / bf16-output tolerance
    ref = mlp_reference(x, params)
    assert bool(jnp.allclose(out_f32, ref, atol=5e-2))
    print("KERNEL_OK")
</pallas_src>

<mosaic_0001>
module attributes {stable_mosaic.version = 11 : i64} {
  func.func @mlp_kernel(%arg0: i32, %arg1: memref<16x128xbf16, #tpu.memory_space<vmem>>, %arg2: memref<128x256xbf16, #tpu.memory_space<vmem>>, %arg3: memref<1x256xf32, #tpu.memory_space<vmem>>, %arg4: memref<256x256xbf16, #tpu.memory_space<vmem>>, %arg5: memref<1x256xf32, #tpu.memory_space<vmem>>, %arg6: memref<256x128xbf16, #tpu.memory_space<vmem>>, %arg7: memref<1x128xf32, #tpu.memory_space<vmem>>, %arg8: memref<16x128xbf16, #tpu.memory_space<vmem>>) attributes {dimension_semantics = [#tpu.dimension_semantics<parallel>], iteration_bounds = array<i64: 1>, scalar_prefetch = 0 : i64, scratch_operands = 0 : i64, tpu.core_type = #tpu.core_type<tc>, window_params = [{transform_indices = @transform_0, window_bounds = array<i64: 16, 128>}, {pipeline_mode = #tpu.pipeline_mode<synchronous>, transform_indices = @transform_1, window_bounds = array<i64: 128, 256>}, {pipeline_mode = #tpu.pipeline_mode<synchronous>, transform_indices = @transform_2, window_bounds = array<i64: 1, 256>}, {pipeline_mode = #tpu.pipeline_mode<synchronous>, transform_indices = @transform_3, window_bounds = array<i64: 256, 256>}, {pipeline_mode = #tpu.pipeline_mode<synchronous>, transform_indices = @transform_4, window_bounds = array<i64: 1, 256>}, {pipeline_mode = #tpu.pipeline_mode<synchronous>, transform_indices = @transform_5, window_bounds = array<i64: 256, 128>}, {pipeline_mode = #tpu.pipeline_mode<synchronous>, transform_indices = @transform_6, window_bounds = array<i64: 1, 128>}, {transform_indices = @transform_7, window_bounds = array<i64: 16, 128>}]} {
    %c0 = arith.constant 0 : index
    %c0_0 = arith.constant 0 : index
    %0 = vector.load %arg1[%c0, %c0_0] : memref<16x128xbf16, #tpu.memory_space<vmem>>, vector<16x128xbf16>
    %c0_1 = arith.constant 0 : index
    %c0_2 = arith.constant 0 : index
    %1 = vector.load %arg2[%c0_1, %c0_2] : memref<128x256xbf16, #tpu.memory_space<vmem>>, vector<128x256xbf16>
    %cst = arith.constant dense<0.000000e+00> : vector<16x256xf32>
    %2 = tpu.matmul %0, %1, %cst {dimension_numbers = #tpu.dot_dimension_numbers<[1], [0], [0], [1], [0, 0, 1, 1], [], []>} : vector<16x128xbf16>, vector<128x256xbf16>, vector<16x256xf32> -> vector<16x256xf32>
    %c0_3 = arith.constant 0 : index
    %c0_4 = arith.constant 0 : index
    %3 = vector.load %arg3[%c0_3, %c0_4] : memref<1x256xf32, #tpu.memory_space<vmem>>, vector<1x256xf32>
    %4 = vector.broadcast %3 : vector<1x256xf32> to vector<16x256xf32>
    %5 = arith.addf %2, %4 : vector<16x256xf32>
    %cst_5 = arith.constant 0.000000e+00 : f32
    %6 = vector.broadcast %cst_5 : f32 to vector<16x256xf32>
    %7 = arith.cmpf ogt, %5, %6 : vector<16x256xf32>
    %cst_6 = arith.constant 0.00999999977 : f32
    %8 = vector.broadcast %cst_6 : f32 to vector<16x256xf32>
    %9 = arith.mulf %8, %5 : vector<16x256xf32>
    %10 = arith.select %7, %5, %9 : vector<16x256xi1>, vector<16x256xf32>
    %11 = arith.truncf %10 : vector<16x256xf32> to vector<16x256xbf16>
    %c0_7 = arith.constant 0 : index
    %c0_8 = arith.constant 0 : index
    %12 = vector.load %arg4[%c0_7, %c0_8] : memref<256x256xbf16, #tpu.memory_space<vmem>>, vector<256x256xbf16>
    %cst_9 = arith.constant dense<0.000000e+00> : vector<16x256xf32>
    %13 = tpu.matmul %11, %12, %cst_9 {dimension_numbers = #tpu.dot_dimension_numbers<[1], [0], [0], [1], [0, 0, 1, 1], [], []>} : vector<16x256xbf16>, vector<256x256xbf16>, vector<16x256xf32> -> vector<16x256xf32>
    %c0_10 = arith.constant 0 : index
    %c0_11 = arith.constant 0 : index
    %14 = vector.load %arg5[%c0_10, %c0_11] : memref<1x256xf32, #tpu.memory_space<vmem>>, vector<1x256xf32>
    %15 = vector.broadcast %14 : vector<1x256xf32> to vector<16x256xf32>
    %16 = arith.addf %13, %15 : vector<16x256xf32>
    %cst_12 = arith.constant 0.000000e+00 : f32
    %17 = vector.broadcast %cst_12 : f32 to vector<16x256xf32>
    %18 = arith.cmpf ogt, %16, %17 : vector<16x256xf32>
    %cst_13 = arith.constant 0.00999999977 : f32
    %19 = vector.broadcast %cst_13 : f32 to vector<16x256xf32>
    %20 = arith.mulf %19, %16 : vector<16x256xf32>
    %21 = arith.select %18, %16, %20 : vector<16x256xi1>, vector<16x256xf32>
    %22 = arith.truncf %21 : vector<16x256xf32> to vector<16x256xbf16>
    %c0_14 = arith.constant 0 : index
    %c0_15 = arith.constant 0 : index
    %23 = vector.load %arg6[%c0_14, %c0_15] : memref<256x128xbf16, #tpu.memory_space<vmem>>, vector<256x128xbf16>
    %cst_16 = arith.constant dense<0.000000e+00> : vector<16x128xf32>
    %24 = tpu.matmul %22, %23, %cst_16 {dimension_numbers = #tpu.dot_dimension_numbers<[1], [0], [0], [1], [0, 0, 1, 1], [], []>} : vector<16x256xbf16>, vector<256x128xbf16>, vector<16x128xf32> -> vector<16x128xf32>
    %c0_17 = arith.constant 0 : index
    %c0_18 = arith.constant 0 : index
    %25 = vector.load %arg7[%c0_17, %c0_18] : memref<1x128xf32, #tpu.memory_space<vmem>>, vector<1x128xf32>
    %26 = vector.broadcast %25 : vector<1x128xf32> to vector<16x128xf32>
    %27 = arith.addf %24, %26 : vector<16x128xf32>
    %28 = tpu.iota {dimensions = array<i32: 1>} : vector<16x128xi32>
    %c2_i32 = arith.constant 2 : i32
    %29 = vector.broadcast %c2_i32 : i32 to vector<16x128xi32>
    %30 = arith.cmpi slt, %28, %29 : vector<16x128xi32>
    %cst_19 = arith.constant 0xFF800000 : f32
    %31 = vector.broadcast %cst_19 : f32 to vector<16x128xf32>
    %32 = arith.select %30, %27, %31 : vector<16x128xi1>, vector<16x128xf32>
    %cst_20 = arith.constant dense<0xFF800000> : vector<16xf32>
    %33 = vector.multi_reduction <maximumf>, %32, %cst_20 [1] : vector<16x128xf32> to vector<16xf32>
    %34 = vector.shape_cast %33 : vector<16xf32> to vector<16x1xf32>
    %35 = vector.broadcast %34 : vector<16x1xf32> to vector<16x128xf32>
    %36 = arith.subf %32, %35 : vector<16x128xf32>
    %37 = math.exp %36 : vector<16x128xf32>
    %cst_21 = arith.constant dense<0.000000e+00> : vector<16xf32>
    %38 = vector.multi_reduction <add>, %37, %cst_21 [1] : vector<16x128xf32> to vector<16xf32>
    %39 = vector.shape_cast %38 : vector<16xf32> to vector<16x1xf32>
    %40 = tpu.reciprocal %39 : vector<16x1xf32> -> vector<16x1xf32>
    %41 = vector.broadcast %40 : vector<16x1xf32> to vector<16x128xf32>
    %42 = arith.mulf %37, %41 : vector<16x128xf32>
    %43 = arith.truncf %42 : vector<16x128xf32> to vector<16x128xbf16>
    %c0_22 = arith.constant 0 : index
    %c0_23 = arith.constant 0 : index
    %44 = vector.load %arg8[%c0_22, %c0_23] : memref<16x128xbf16, #tpu.memory_space<vmem>>, vector<16x128xbf16>
    tpu.vector_store %arg8[%c0_22, %c0_23], %43 {strides = array<i32>} : memref<16x128xbf16, #tpu.memory_space<vmem>>, vector<16x128xbf16>,
    return
  }
  func.func @transform_0(%arg0: i32) -> (i32, i32) {
    %c0_i32 = arith.constant 0 : i32
    %c0_i32_0 = arith.constant 0 : i32
    return %arg0, %c0_i32 : i32, i32
  }
  func.func @transform_1(%arg0: i32) -> (i32, i32) {
    %c0_i32 = arith.constant 0 : i32
    %c0_i32_0 = arith.constant 0 : i32
    %c0_i32_1 = arith.constant 0 : i32
    return %c0_i32, %c0_i32_0 : i32, i32
  }
  func.func @transform_2(%arg0: i32) -> (i32, i32) {
    %c0_i32 = arith.constant 0 : i32
    %c0_i32_0 = arith.constant 0 : i32
    %c0_i32_1 = arith.constant 0 : i32
    return %c0_i32, %c0_i32_0 : i32, i32
  }
  func.func @transform_3(%arg0: i32) -> (i32, i32) {
    %c0_i32 = arith.constant 0 : i32
    %c0_i32_0 = arith.constant 0 : i32
    %c0_i32_1 = arith.constant 0 : i32
    return %c0_i32, %c0_i32_0 : i32, i32
  }
  func.func @transform_4(%arg0: i32) -> (i32, i32) {
    %c0_i32 = arith.constant 0 : i32
    %c0_i32_0 = arith.constant 0 : i32
    %c0_i32_1 = arith.constant 0 : i32
    return %c0_i32, %c0_i32_0 : i32, i32
  }
  func.func @transform_5(%arg0: i32) -> (i32, i32) {
    %c0_i32 = arith.constant 0 : i32
    %c0_i32_0 = arith.constant 0 : i32
    %c0_i32_1 = arith.constant 0 : i32
    return %c0_i32, %c0_i32_0 : i32, i32
  }
  func.func @transform_6(%arg0: i32) -> (i32, i32) {
    %c0_i32 = arith.constant 0 : i32
    %c0_i32_0 = arith.constant 0 : i32
    %c0_i32_1 = arith.constant 0 : i32
    return %c0_i32, %c0_i32_0 : i32, i32
  }
  func.func @transform_7(%arg0: i32) -> (i32, i32) {
    %c0_i32 = arith.constant 0 : i32
    %c0_i32_0 = arith.constant 0 : i32
    return %arg0, %c0_i32 : i32, i32
  }
}

</mosaic_0001>

<llo_original>
// kernel: tpu_custom_call.1
$region0: #{tpu_custom_call.1}
  #allocation0 [shape = 'u32[]', space=smem, size = 0x4, offset = 0x4, fixed_abs, tag = 'smem constant byte address 0x4 - core index']
  #allocation1 [shape = 'u32[144,128]{1,0:T(1,128)}', space=vmem, size = 0x12000, scoped, tag = 'internal scratch']
  %s0 = inlined_call_operand.hbm [shape: bf16[2,128], index: 0, kind: input, shape index: {}]
  %s1 = inlined_call_operand.hbm [shape: bf16[128,256], index: 1, kind: input, shape index: {}]
  %s2 = inlined_call_operand.vmem [shape: f32[1,256], index: 2, kind: input, shape index: {}]
  %s3 = inlined_call_operand.hbm [shape: bf16[256,256], index: 3, kind: input, shape index: {}]
  %s4 = inlined_call_operand.vmem [shape: f32[1,256], index: 4, kind: input, shape index: {}]
  %s5 = inlined_call_operand.hbm [shape: bf16[256,128], index: 5, kind: input, shape index: {}]
  %s6 = inlined_call_operand.vmem [shape: f32[1,128], index: 6, kind: input, shape index: {}]
  %s7 = inlined_call_operand.hbm [shape: bf16[2,128], index: 7, kind: output, shape index: {}]
  %s8 = sld [smem:[#allocation0]]
  $region54: #{tpu_custom_call.1} parent=0
    _
  %s10 = ssub.s32 1, %s8
  %s11 = scalar_select 0, %s10, %s8
  $region1: #{tpu_custom_call.1} parent=0
    #allocation2 [shape = 'u8[4096]{0}', space=vmem, size = 0x1000, scoped, tag = 'input window, operand 0, single buffered']
    #allocation3 [shape = 's32[1]{0}', space=sflag, size = 0x4, scoped, tag = 'scoped memory for tpu_custom_call.1']
    #allocation4 [shape = 's32[1]{0}', space=sflag, size = 0x4, scoped, tag = 'scoped memory for tpu_custom_call.1']
    #allocation5 [shape = 'u8[65536]{0}', space=vmem, size = 0x10000, scoped, tag = 'input window, operand 1, single buffered']
    #allocation6 [shape = 's32[1]{0}', space=sflag, size = 0x4, scoped, tag = 'scoped memory for tpu_custom_call.1']
    #allocation7 [shape = 'u8[131072]{0}', space=vmem, size = 0x20000, scoped, tag = 'input window, operand 3, single buffered']
    #allocation8 [shape = 'u8[65536]{0}', space=vmem, size = 0x10000, scoped, tag = 'input window, operand 5, single buffered']
    #allocation9 [shape = 's32[1]{0}', space=sflag, size = 0x4, scoped, tag = 'scoped memory for tpu_custom_call.1']
    #allocation10 [shape = 'u8[4096]{0}', space=vmem, size = 0x1000, scoped, tag = 'output window, operand 0, single buffered']
    %12 = vsyncpa [#allocation3], 0
    %13 = vsyncpa [#allocation6], 0
    %14 = vsyncpa [#allocation9], 0
    %15 = vsyncpa [#allocation4], 0
    // Predicated region
    $region2: #{tpu_custom_call.1} parent=1 // pred_check
      _
    $region3: #{tpu_custom_call.1} parent=1 // pred_check_branch
      %17 = sbr.rel (0) target = $region5
    $region4: #{tpu_custom_call.1} parent=1 // pred_region
      %s19 = ssub.s32 128, 16
      %20 = vsyncadd [#allocation3], %s19
      %s21 = sshll.u32 [#allocation2], 4
      %s22 = int_to_ptr.vmem [resolvable:$true] %s21
      %27 = dma.hbm_to_vmem [thread:$0]  %s0, 16, %s22, [#allocation3], 16, 16, 1
    $region5: #{tpu_custom_call.1} parent=1 // pred_fallthru
      _
    // Predicated region
    $region6: #{tpu_custom_call.1} parent=1 // pred_check
      _
    $region7: #{tpu_custom_call.1} parent=1 // pred_check_branch
      %29 = sbr.rel (0) target = $region9
    $region8: #{tpu_custom_call.1} parent=1 // pred_region
      %s31 = ssub.s32 2048, 2048
      %32 = vsyncadd [#allocation6], %s31
      %s33 = sshll.u32 [#allocation5], 4
      %s34 = int_to_ptr.vmem [resolvable:$true] %s33
      %39 = dma.hbm_to_vmem [thread:$0]  %s1, 2048, %s34, [#allocation6], 128, 128, 8
    $region9: #{tpu_custom_call.1} parent=1 // pred_fallthru
      _
    // Predicated region
    $region10: #{tpu_custom_call.1} parent=1 // pred_check
      _
    $region11: #{tpu_custom_call.1} parent=1 // pred_check_branch
      %41 = sbr.rel (0) target = $region13
    $region12: #{tpu_custom_call.1} parent=1 // pred_region
      _
    $region13: #{tpu_custom_call.1} parent=1 // pred_fallthru
      _
    // Predicated region
    $region14: #{tpu_custom_call.1} parent=1 // pred_check
      _
    $region15: #{tpu_custom_call.1} parent=1 // pred_check_branch
      %43 = sbr.rel (0) target = $region17
    $region16: #{tpu_custom_call.1} parent=1 // pred_region
      %s45 = ssub.s32 4096, 4096
      %46 = vsyncadd [#allocation6], %s45
      %s47 = sshll.u32 [#allocation7], 4
      %s48 = int_to_ptr.vmem [resolvable:$true] %s47
      %53 = dma.hbm_to_vmem [thread:$0]  %s3, 4096, %s48, [#allocation6], 128, 128, 8
    $region17: #{tpu_custom_call.1} parent=1 // pred_fallthru
      _
    // Predicated region
    $region18: #{tpu_custom_call.1} parent=1 // pred_check
      _
    $region19: #{tpu_custom_call.1} parent=1 // pred_check_branch
      %55 = sbr.rel (0) target = $region21
    $region20: #{tpu_custom_call.1} parent=1 // pred_region
      _
    $region21: #{tpu_custom_call.1} parent=1 // pred_fallthru
      _
    // Predicated region
    $region22: #{tpu_custom_call.1} parent=1 // pred_check
      _
    $region23: #{tpu_custom_call.1} parent=1 // pred_check_branch
      %57 = sbr.rel (0) target = $region25
    $region24: #{tpu_custom_call.1} parent=1 // pred_region
      %s59 = ssub.s32 2048, 2048
      %60 = vsyncadd [#allocation9], %s59
      %s61 = sshll.u32 [#allocation8], 4
      %s62 = int_to_ptr.vmem [resolvable:$true] %s61
      %67 = dma.hbm_to_vmem [thread:$0]  %s5, 2048, %s62, [#allocation9], 64, 64, 4
    $region25: #{tpu_custom_call.1} parent=1 // pred_fallthru
      _
    // Predicated region
    $region26: #{tpu_custom_call.1} parent=1 // pred_check
      _
    $region27: #{tpu_custom_call.1} parent=1 // pred_check_branch
      %69 = sbr.rel (0) target = $region29
    $region28: #{tpu_custom_call.1} parent=1 // pred_region
      _
    $region29: #{tpu_custom_call.1} parent=1 // pred_fallthru
      _
    // Predicated region
    $region30: #{tpu_custom_call.1} parent=1 // pred_check
      _
    $region31: #{tpu_custom_call.1} parent=1 // pred_check_branch
      %71 = sbr.rel (0) target = $region33
    $region32: #{tpu_custom_call.1} parent=1 // pred_region
      %72 = dma.done [#allocation3], 128
    $region33: #{tpu_custom_call.1} parent=1 // pred_fallthru
      _
    // Predicated region
    $region34: #{tpu_custom_call.1} parent=1 // pred_check
      _
    $region35: #{tpu_custom_call.1} parent=1 // pred_check_branch
      %74 = sbr.rel (0) target = $region37
    $region36: #{tpu_custom_call.1} parent=1 // pred_region
      %75 = dma.done [#allocation6], 2048
    $region37: #{tpu_custom_call.1} parent=1 // pred_fallthru
      _
    // Predicated region
    $region38: #{tpu_custom_call.1} parent=1 // pred_check
      _
    $region39: #{tpu_custom_call.1} parent=1 // pred_check_branch
      %77 = sbr.rel (0) target = $region41
    $region40: #{tpu_custom_call.1} parent=1 // pred_region
      %78 = dma.done [#allocation6], 4096
    $region41: #{tpu_custom_call.1} parent=1 // pred_fallthru
      _
    // Predicated region
    $region42: #{tpu_custom_call.1} parent=1 // pred_check
      _
    $region43: #{tpu_custom_call.1} parent=1 // pred_check_branch
      %80 = sbr.rel (0) target = $region45
    $region44: #{tpu_custom_call.1} parent=1 // pred_region
      %81 = dma.done [#allocation9], 2048
    $region45: #{tpu_custom_call.1} parent=1 // pred_fallthru
      _
    %v83 = vld [vmem:[#allocation2] sm:$0x1]
    %v84 = vld [vmem:[#allocation2 + $0x1] sm:$0x1]
    %v85 = vld [vmem:[#allocation2 + $0x2] sm:$0x1]
    %v86 = vld [vmem:[#allocation2 + $0x3] sm:$0x1]
    %v87 = vld [vmem:[#allocation2 + $0x4] sm:$0x1]
    %v88 = vld [vmem:[#allocation2 + $0x5] sm:$0x1]
    %v89 = vld [vmem:[#allocation2 + $0x6] sm:$0x1]
    %v90 = vld [vmem:[#allocation2 + $0x7] sm:$0x1]
    %v91 = vld [vmem:[#allocation5] sm:$0xff]
    %v92 = vld [vmem:[#allocation5 + $0x8] sm:$0xff]
    %v93 = vld [vmem:[#allocation5 + $0x10] sm:$0xff]
    %v94 = vld [vmem:[#allocation5 + $0x18] sm:$0xff]
    %v95 = vld [vmem:[#allocation5 + $0x20] sm:$0xff]
    %v96 = vld [vmem:[#allocation5 + $0x28] sm:$0xff]
    %v97 = vld [vmem:[#allocation5 + $0x30] sm:$0xff]
    %v98 = vld [vmem:[#allocation5 + $0x38] sm:$0xff]
    %v99 = vld [vmem:[#allocation5 + $0x40] sm:$0xff]
    %v100 = vld [vmem:[#allocation5 + $0x48] sm:$0xff]
    %v101 = vld [vmem:[#allocation5 + $0x50] sm:$0xff]
    %v102 = vld [vmem:[#allocation5 + $0x58] sm:$0xff]
    %v103 = vld [vmem:[#allocation5 + $0x60] sm:$0xff]
    %v104 = vld [vmem:[#allocation5 + $0x68] sm:$0xff]
    %v105 = vld [vmem:[#allocation5 + $0x70] sm:$0xff]
    %v106 = vld [vmem:[#allocation5 + $0x78] sm:$0xff]
    %v107 = vld [vmem:[%s2] sm:$0x3]
    %v109 = vlaneseq
    %v110 = vshrl.u32 %v109, 7
    %v111 = vsub.s32 0, %v110
    %v112 = vrot.slane %v107, %v111
    %v113 = vlaneseq
    %v114 = vshrl.u32 %v113, 7
    %v115 = vsub.s32 1, %v114
    %v116 = vrot.slane %v107, %v115
    %v127 = vcombine.low %v83, %v84
    %v128 = vcombine.low %v85, %v86
    %v129 = vcombine.low %v87, %v88
    %v130 = vcombine.low %v89, %v90
    %v132 = vunpack.c.l.s4 1966171168
    %v133 = vunpack.c.0.s8 %v132
    %v134 = vlaneseq
    %v135 = vshrl.u32 %v134, 7
    %v136 = vsub.s32 %v133, %v135
    %v137 = vrot.slane %v127, %v136
    %v139 = vunpack.c.l.s4 1966171168
    %v140 = vunpack.c.0.s8 %v139
    %v141 = vlaneseq
    %v142 = vshrl.u32 %v141, 7
    %v143 = vsub.s32 %v140, %v142
    %v144 = vrot.slane %v128, %v143
    %v146 = vunpack.c.l.s4 1966171168
    %v147 = vunpack.c.0.s8 %v146
    %v148 = vlaneseq
    %v149 = vshrl.u32 %v148, 7
    %v150 = vsub.s32 %v147, %v149
    %v151 = vrot.slane %v129, %v150
    %v153 = vunpack.c.l.s4 1966171168
    %v154 = vunpack.c.0.s8 %v153
    %v155 = vlaneseq
    %v156 = vshrl.u32 %v155, 7
    %v157 = vsub.s32 %v154, %v156
    %v158 = vrot.slane %v130, %v157
    %v159 = vcombine.low %v137, %v144
    %v160 = vcombine.low %v151, %v158
    %v162 = vunpack.c.l.s4 1966171168
    %v163 = vunpack.c.0.s8 %v162
    %v164 = vlaneseq
    %v165 = vshrl.u32 %v164, 7
    %v166 = vsub.s32 %v163, %v165
    %v167 = vrot.slane %v159, %v166
    %v169 = vunpack.c.l.s4 1966171168
    %v170 = vunpack.c.0.s8 %v169
    %v171 = vlaneseq
    %v172 = vshrl.u32 %v171, 7
    %v173 = vsub.s32 %v170, %v172
    %v174 = vrot.slane %v160, %v173
    %v175 = vcombine.low %v167, %v174
    %v193 = vunpack.c.l.b16 %v91
    %v194 = vunpack.c.h.b16 %v91
    %v195 = vunpack.c.l.b16 %v92
    %v196 = vunpack.c.h.b16 %v92
    %v197 = vunpack.c.l.b16 %v93
    %v198 = vunpack.c.h.b16 %v93
    %v199 = vunpack.c.l.b16 %v94
    %v200 = vunpack.c.h.b16 %v94
    %v201 = vunpack.c.l.b16 %v95
    %v202 = vunpack.c.h.b16 %v95
    %v203 = vunpack.c.l.b16 %v96
    %v204 = vunpack.c.h.b16 %v96
    %v205 = vunpack.c.l.b16 %v97
    %v206 = vunpack.c.h.b16 %v97
    %v207 = vunpack.c.l.b16 %v98
    %v208 = vunpack.c.h.b16 %v98
    %v209 = vunpack.c.l.b16 %v99
    %v210 = vunpack.c.h.b16 %v99
    %v211 = vunpack.c.l.b16 %v100
    %v212 = vunpack.c.h.b16 %v100
    %v213 = vunpack.c.l.b16 %v101
    %v214 = vunpack.c.h.b16 %v101
    %v215 = vunpack.c.l.b16 %v102
    %v216 = vunpack.c.h.b16 %v102
    %v217 = vunpack.c.l.b16 %v103
    %v218 = vunpack.c.h.b16 %v103
    %v219 = vunpack.c.l.b16 %v104
    %v220 = vunpack.c.h.b16 %v104
    %v221 = vunpack.c.l.b16 %v105
    %v222 = vunpack.c.h.b16 %v105
    %v223 = vunpack.c.l.b16 %v106
    %v224 = vunpack.c.h.b16 %v106
    %v225 = vpack.c.b16 %v195, %v193
    %v226 = vpack.c.b16 %v196, %v194
    %v227 = vpack.c.b16 %v199, %v197
    %v228 = vpack.c.b16 %v200, %v198
    %v229 = vpack.c.b16 %v203, %v201
    %v230 = vpack.c.b16 %v204, %v202
    %v231 = vpack.c.b16 %v207, %v205
    %v232 = vpack.c.b16 %v208, %v206
    %v233 = vpack.c.b16 %v211, %v209
    %v234 = vpack.c.b16 %v212, %v210
    %v235 = vpack.c.b16 %v215, %v213
    %v236 = vpack.c.b16 %v216, %v214
    %v237 = vpack.c.b16 %v219, %v217
    %v238 = vpack.c.b16 %v220, %v218
    %v239 = vpack.c.b16 %v223, %v221
    %v240 = vpack.c.b16 %v224, %v222
    %257 = vmatprep.subr.bf16.mxu0 %v240
    %258 = vmatpush1.bf16.msra.mxu0 %v239
    %259 = vmatprep.subr.bf16.mxu0 %v238
    %260 = vmatpush1.bf16.msra.mxu0 %v237
    %261 = vmatprep.subr.bf16.mxu0 %v236
    %262 = vmatpush1.bf16.msra.mxu0 %v235
    %263 = vmatprep.subr.bf16.mxu0 %v234
    %264 = vmatpush1.bf16.msra.mxu0 %v233
    %265 = vmatprep.subr.bf16.mxu0 %v232
    %266 = vmatpush1.bf16.msra.mxu0 %v231
    %267 = vmatprep.subr.bf16.mxu0 %v230
    %268 = vmatpush1.bf16.msra.mxu0 %v229
    %269 = vmatprep.subr.bf16.mxu0 %v228
    %270 = vmatpush1.bf16.msra.mxu0 %v227
    %271 = vmatprep.subr.bf16.mxu0 %v226
    %272 = vmatpush1.bf16.msra.mxu0 %v225
    %273 = vmatprep.subr.bf16.mxu0 0
    %274 = vmatpush2.bf16.msra.mxu0 0
    %275 = vmatprep.subr.bf16.mxu0 0
    %276 = vmatpush2.bf16.msra.mxu0 0
    %277 = vmatprep.subr.bf16.mxu0 0
    %278 = vmatpush2.bf16.msra.mxu0 0
    %279 = vmatprep.subr.bf16.mxu0 0
    %280 = vmatpush2.bf16.msra.mxu0 0
    %281 = vmatprep.subr.bf16.mxu0 0
    %282 = vmatpush2.bf16.msra.mxu0 0
    %283 = vmatprep.subr.bf16.mxu0 0
    %284 = vmatpush2.bf16.msra.mxu0 0
    %285 = vmatprep.subr.bf16.mxu0 0
    %286 = vmatpush2.bf16.msra.mxu0 0
    %287 = vmatprep.subr.bf16.mxu0 0
    %288 = vmatpush2.bf16.msra.mxu0 0
    %289 = vmatprep.mubr.bf16.mxu0 0
    %290 = vmatmul.mubr.bf16.gmra.mxu0 %v175
    %v291 = vpop.f32.mrf.mxu0
    %v292 = vadd.f32 %v112, %v291
    %v293 = vpop.f32.mrf.mxu0
    %v294 = vadd.f32 %v116, %v293
    %v295 = vpop.f32.mrf.mxu0
    %v296 = vadd.f32 %v112, %v295
    %v297 = vpop.f32.mrf.mxu0
    %v298 = vadd.f32 %v116, %v297
    %299 = vdwg.mxu0
    %vm300 = vcmp.gt.f32.partialorder %v292, 0.0
    %vm301 = vcmp.gt.f32.partialorder %v294, 0.0
    %vm302 = vcmp.gt.f32.partialorder %v296, 0.0
    %vm303 = vcmp.gt.f32.partialorder %v298, 0.0
    %v304 = vmul.f32 %v292, 0.01
    %v305 = vmul.f32 %v294, 0.01
    %v306 = vmul.f32 %v296, 0.01
    %v307 = vmul.f32 %v298, 0.01
    %v308 = vsel %vm300, %v292, %v304
    %v309 = vsel %vm301, %v294, %v305
    %v310 = vsel %vm302, %v296, %v306
    %v311 = vsel %vm303, %v298, %v307
    %v312 = vpack.c.bf16 %v310, %v308
    %v313 = vpack.c.bf16 %v311, %v309
    %v314 = vld [vmem:[#allocation7] sm:$0xff]
    %v315 = vld [vmem:[#allocation7 + $0x8] sm:$0xff]
    %v316 = vld [vmem:[#allocation7 + $0x10] sm:$0xff]
    %v317 = vld [vmem:[#allocation7 + $0x18] sm:$0xff]
    %v318 = vld [vmem:[#allocation7 + $0x20] sm:$0xff]
    %v319 = vld [vmem:[#allocation7 + $0x28] sm:$0xff]
    %v320 = vld [vmem:[#allocation7 + $0x30] sm:$0xff]
    %v321 = vld [vmem:[#allocation7 + $0x38] sm:$0xff]
    %v322 = vld [vmem:[#allocation7 + $0x40] sm:$0xff]
    %v323 = vld [vmem:[#allocation7 + $0x48] sm:$0xff]
    %v324 = vld [vmem:[#allocation7 + $0x50] sm:$0xff]
    %v325 = vld [vmem:[#allocation7 + $0x58] sm:$0xff]
    %v326 = vld [vmem:[#allocation7 + $0x60] sm:$0xff]
    %v327 = vld [vmem:[#allocation7 + $0x68] sm:$0xff]
    %v328 = vld [vmem:[#allocation7 + $0x70] sm:$0xff]
    %v329 = vld [vmem:[#allocation7 + $0x78] sm:$0xff]
    %v330 = vld [vmem:[#allocation7 + $0x80] sm:$0xff]
    %v331 = vld [vmem:[#allocation7 + $0x88] sm:$0xff]
    %v332 = vld [vmem:[#allocation7 + $0x90] sm:$0xff]
    %v333 = vld [vmem:[#allocation7 + $0x98] sm:$0xff]
    %v334 = vld [vmem:[#allocation7 + $0xa0] sm:$0xff]
    %v335 = vld [vmem:[#allocation7 + $0xa8] sm:$0xff]
    %v336 = vld [vmem:[#allocation7 + $0xb0] sm:$0xff]
    %v337 = vld [vmem:[#allocation7 + $0xb8] sm:$0xff]
    %v338 = vld [vmem:[#allocation7 + $0xc0] sm:$0xff]
    %v339 = vld [vmem:[#allocation7 + $0xc8] sm:$0xff]
    %v340 = vld [vmem:[#allocation7 + $0xd0] sm:$0xff]
    %v341 = vld [vmem:[#allocation7 + $0xd8] sm:$0xff]
    %v342 = vld [vmem:[#allocation7 + $0xe0] sm:$0xff]
    %v343 = vld [vmem:[#allocation7 + $0xe8] sm:$0xff]
    %v344 = vld [vmem:[#allocation7 + $0xf0] sm:$0xff]
    %v345 = vld [vmem:[#allocation7 + $0xf8] sm:$0xff]
    %v346 = vld [vmem:[%s4] sm:$0x3]
    %v348 = vlaneseq
    %v349 = vshrl.u32 %v348, 7
    %v350 = vsub.s32 0, %v349
    %v351 = vrot.slane %v346, %v350
    %v352 = vlaneseq
    %v353 = vshrl.u32 %v352, 7
    %v354 = vsub.s32 1, %v353
    %v355 = vrot.slane %v346, %v354
    %v390 = vunpack.c.l.b16 %v314
    %v391 = vunpack.c.h.b16 %v314
    %v392 = vunpack.c.l.b16 %v315
    %v393 = vunpack.c.h.b16 %v315
    %v394 = vunpack.c.l.b16 %v316
    %v395 = vunpack.c.h.b16 %v316
    %v396 = vunpack.c.l.b16 %v317
    %v397 = vunpack.c.h.b16 %v317
    %v398 = vunpack.c.l.b16 %v318
    %v399 = vunpack.c.h.b16 %v318
    %v400 = vunpack.c.l.b16 %v319
    %v401 = vunpack.c.h.b16 %v319
    %v402 = vunpack.c.l.b16 %v320
    %v403 = vunpack.c.h.b16 %v320
    %v404 = vunpack.c.l.b16 %v321
    %v405 = vunpack.c.h.b16 %v321
    %v406 = vunpack.c.l.b16 %v322
    %v407 = vunpack.c.h.b16 %v322
    %v408 = vunpack.c.l.b16 %v323
    %v409 = vunpack.c.h.b16 %v323
    %v410 = vunpack.c.l.b16 %v324
    %v411 = vunpack.c.h.b16 %v324
    %v412 = vunpack.c.l.b16 %v325
    %v413 = vunpack.c.h.b16 %v325
    %v414 = vunpack.c.l.b16 %v326
    %v415 = vunpack.c.h.b16 %v326
    %v416 = vunpack.c.l.b16 %v327
    %v417 = vunpack.c.h.b16 %v327
    %v418 = vunpack.c.l.b16 %v328
    %v419 = vunpack.c.h.b16 %v328
    %v420 = vunpack.c.l.b16 %v329
    %v421 = vunpack.c.h.b16 %v329
    %v422 = vunpack.c.l.b16 %v330
    %v423 = vunpack.c.h.b16 %v330
    %v424 = vunpack.c.l.b16 %v331
    %v425 = vunpack.c.h.b16 %v331
    %v426 = vunpack.c.l.b16 %v332
    %v427 = vunpack.c.h.b16 %v332
    %v428 = vunpack.c.l.b16 %v333
    %v429 = vunpack.c.h.b16 %v333
    %v430 = vunpack.c.l.b16 %v334
    %v431 = vunpack.c.h.b16 %v334
    %v432 = vunpack.c.l.b16 %v335
    %v433 = vunpack.c.h.b16 %v335
    %v434 = vunpack.c.l.b16 %v336
    %v435 = vunpack.c.h.b16 %v336
    %v436 = vunpack.c.l.b16 %v337
    %v437 = vunpack.c.h.b16 %v337
    %v438 = vunpack.c.l.b16 %v338
    %v439 = vunpack.c.h.b16 %v338
    %v440 = vunpack.c.l.b16 %v339
    %v441 = vunpack.c.h.b16 %v339
    %v442 = vunpack.c.l.b16 %v340
    %v443 = vunpack.c.h.b16 %v340
    %v444 = vunpack.c.l.b16 %v341
    %v445 = vunpack.c.h.b16 %v341
    %v446 = vunpack.c.l.b16 %v342
    %v447 = vunpack.c.h.b16 %v342
    %v448 = vunpack.c.l.b16 %v343
    %v449 = vunpack.c.h.b16 %v343
    %v450 = vunpack.c.l.b16 %v344
    %v451 = vunpack.c.h.b16 %v344
    %v452 = vunpack.c.l.b16 %v345
    %v453 = vunpack.c.h.b16 %v345
    %v454 = vpack.c.b16 %v392, %v390
    %v455 = vpack.c.b16 %v393, %v391
    %v456 = vpack.c.b16 %v396, %v394
    %v457 = vpack.c.b16 %v397, %v395
    %v458 = vpack.c.b16 %v400, %v398
    %v459 = vpack.c.b16 %v401, %v399
    %v460 = vpack.c.b16 %v404, %v402
    %v461 = vpack.c.b16 %v405, %v403
    %v462 = vpack.c.b16 %v408, %v406
    %v463 = vpack.c.b16 %v409, %v407
    %v464 = vpack.c.b16 %v412, %v410
    %v465 = vpack.c.b16 %v413, %v411
    %v466 = vpack.c.b16 %v416, %v414
    %v467 = vpack.c.b16 %v417, %v415
    %v468 = vpack.c.b16 %v420, %v418
    %v469 = vpack.c.b16 %v421, %v419
    %v470 = vpack.c.b16 %v424, %v422
    %v471 = vpack.c.b16 %v425, %v423
    %v472 = vpack.c.b16 %v428, %v426
    %v473 = vpack.c.b16 %v429, %v427
    %v474 = vpack.c.b16 %v432, %v430
    %v475 = vpack.c.b16 %v433, %v431
    %v476 = vpack.c.b16 %v436, %v434
    %v477 = vpack.c.b16 %v437, %v435
    %v478 = vpack.c.b16 %v440, %v438
    %v479 = vpack.c.b16 %v441, %v439
    %v480 = vpack.c.b16 %v444, %v442
    %v481 = vpack.c.b16 %v445, %v443
    %v482 = vpack.c.b16 %v448, %v446
    %v483 = vpack.c.b16 %v449, %v447
    %v484 = vpack.c.b16 %v452, %v450
    %v485 = vpack.c.b16 %v453, %v451
    %518 = vmatprep.subr.bf16.mxu0 %v469
    %519 = vmatpush1.bf16.msra.mxu0 %v468
    %520 = vmatprep.subr.bf16.mxu0 %v467
    %521 = vmatpush1.bf16.msra.mxu0 %v466
    %522 = vmatprep.subr.bf16.mxu0 %v465
    %523 = vmatpush1.bf16.msra.mxu0 %v464
    %524 = vmatprep.subr.bf16.mxu0 %v463
    %525 = vmatpush1.bf16.msra.mxu0 %v462
    %526 = vmatprep.subr.bf16.mxu0 %v461
    %527 = vmatpush1.bf16.msra.mxu0 %v460
    %528 = vmatprep.subr.bf16.mxu0 %v459
    %529 = vmatpush1.bf16.msra.mxu0 %v458
    %530 = vmatprep.subr.bf16.mxu0 %v457
    %531 = vmatpush1.bf16.msra.mxu0 %v456
    %532 = vmatprep.subr.bf16.mxu0 %v455
    %533 = vmatpush1.bf16.msra.mxu0 %v454
    %534 = vmatprep.subr.bf16.mxu0 %v485
    %535 = vmatpush2.bf16.msra.mxu0 %v484
    %536 = vmatprep.subr.bf16.mxu0 %v483
    %537 = vmatpush2.bf16.msra.mxu0 %v482
    %538 = vmatprep.subr.bf16.mxu0 %v481
    %539 = vmatpush2.bf16.msra.mxu0 %v480
    %540 = vmatprep.subr.bf16.mxu0 %v479
    %541 = vmatpush2.bf16.msra.mxu0 %v478
    %542 = vmatprep.subr.bf16.mxu0 %v477
    %543 = vmatpush2.bf16.msra.mxu0 %v476
    %544 = vmatprep.subr.bf16.mxu0 %v475
    %545 = vmatpush2.bf16.msra.mxu0 %v474
    %546 = vmatprep.subr.bf16.mxu0 %v473
    %547 = vmatpush2.bf16.msra.mxu0 %v472
    %548 = vmatprep.subr.bf16.mxu0 %v471
    %549 = vmatpush2.bf16.msra.mxu0 %v470
    %550 = vmatprep.mubr.bf16.mxu0 %v313
    %551 = vmatmul.mubr.bf16.gmra.mxu0 %v312
    %v552 = vpop.f32.mrf.mxu0
    %v553 = vadd.f32 %v351, %v552
    %v554 = vpop.f32.mrf.mxu0
    %v555 = vadd.f32 %v355, %v554
    %v556 = vpop.f32.mrf.mxu0
    %v557 = vadd.f32 %v351, %v556
    %v558 = vpop.f32.mrf.mxu0
    %v559 = vadd.f32 %v355, %v558
    %560 = vdwg.mxu0
    %vm561 = vcmp.gt.f32.partialorder %v553, 0.0
    %vm562 = vcmp.gt.f32.partialorder %v555, 0.0
    %vm563 = vcmp.gt.f32.partialorder %v557, 0.0
    %vm564 = vcmp.gt.f32.partialorder %v559, 0.0
    %v565 = vmul.f32 %v553, 0.01
    %v566 = vmul.f32 %v555, 0.01
    %v567 = vmul.f32 %v557, 0.01
    %v568 = vmul.f32 %v559, 0.01
    %v569 = vsel %vm561, %v553, %v565
    %v570 = vsel %vm562, %v555, %v566
    %v571 = vsel %vm563, %v557, %v567
    %v572 = vsel %vm564, %v559, %v568
    %v573 = vpack.c.bf16 %v571, %v569
    %v574 = vpack.c.bf16 %v572, %v570
    %v575 = vld [vmem:[#allocation8] sm:$0xf]
    %v576 = vld [vmem:[#allocation8 + $0x4] sm:$0xf]
    %v577 = vld [vmem:[#allocation8 + $0x8] sm:$0xf]
    %v578 = vld [vmem:[#allocation8 + $0xc] sm:$0xf]
    %v579 = vld [vmem:[#allocation8 + $0x10] sm:$0xf]
    %v580 = vld [vmem:[#allocation8 + $0x14] sm:$0xf]
    %v581 = vld [vmem:[#allocation8 + $0x18] sm:$0xf]
    %v582 = vld [vmem:[#allocation8 + $0x1c] sm:$0xf]
    %v583 = vld [vmem:[#allocation8 + $0x20] sm:$0xf]
    %v584 = vld [vmem:[#allocation8 + $0x24] sm:$0xf]
    %v585 = vld [vmem:[#allocation8 + $0x28] sm:$0xf]
    %v586 = vld [vmem:[#allocation8 + $0x2c] sm:$0xf]
    %v587 = vld [vmem:[#allocation8 + $0x30] sm:$0xf]
    %v588 = vld [vmem:[#allocation8 + $0x34] sm:$0xf]
    %v589 = vld [vmem:[#allocation8 + $0x38] sm:$0xf]
    %v590 = vld [vmem:[#allocation8 + $0x3c] sm:$0xf]
    %v591 = vld [vmem:[#allocation8 + $0x40] sm:$0xf]
    %v592 = vld [vmem:[#allocation8 + $0x44] sm:$0xf]
    %v593 = vld [vmem:[#allocation8 + $0x48] sm:$0xf]
    %v594 = vld [vmem:[#allocation8 + $0x4c] sm:$0xf]
    %v595 = vld [vmem:[#allocation8 + $0x50] sm:$0xf]
    %v596 = vld [vmem:[#allocation8 + $0x54] sm:$0xf]
    %v597 = vld [vmem:[#allocation8 + $0x58] sm:$0xf]
    %v598 = vld [vmem:[#allocation8 + $0x5c] sm:$0xf]
    %v599 = vld [vmem:[#allocation8 + $0x60] sm:$0xf]
    %v600 = vld [vmem:[#allocation8 + $0x64] sm:$0xf]
    %v601 = vld [vmem:[#allocation8 + $0x68] sm:$0xf]
    %v602 = vld [vmem:[#allocation8 + $0x6c] sm:$0xf]
    %v603 = vld [vmem:[#allocation8 + $0x70] sm:$0xf]
    %v604 = vld [vmem:[#allocation8 + $0x74] sm:$0xf]
    %v605 = vld [vmem:[#allocation8 + $0x78] sm:$0xf]
    %v606 = vld [vmem:[#allocation8 + $0x7c] sm:$0xf]
    %v607 = vld [vmem:[%s6] sm:$0x1]
    %v609 = vlaneseq
    %v610 = vshrl.u32 %v609, 7
    %v611 = vsub.s32 0, %v610
    %v612 = vrot.slane %v607, %v611
    %v646 = vunpack.c.l.b16 %v575
    %v647 = vunpack.c.l.b16 %v576
    %v648 = vunpack.c.l.b16 %v577
    %v649 = vunpack.c.l.b16 %v578
    %v650 = vunpack.c.l.b16 %v579
    %v651 = vunpack.c.l.b16 %v580
    %v652 = vunpack.c.l.b16 %v581
    %v653 = vunpack.c.l.b16 %v582
    %v654 = vunpack.c.l.b16 %v583
    %v655 = vunpack.c.l.b16 %v584
    %v656 = vunpack.c.l.b16 %v585
    %v657 = vunpack.c.l.b16 %v586
    %v658 = vunpack.c.l.b16 %v587
    %v659 = vunpack.c.l.b16 %v588
    %v660 = vunpack.c.l.b16 %v589
    %v661 = vunpack.c.l.b16 %v590
    %v662 = vunpack.c.l.b16 %v591
    %v663 = vunpack.c.l.b16 %v592
    %v664 = vunpack.c.l.b16 %v593
    %v665 = vunpack.c.l.b16 %v594
    %v666 = vunpack.c.l.b16 %v595
    %v667 = vunpack.c.l.b16 %v596
    %v668 = vunpack.c.l.b16 %v597
    %v669 = vunpack.c.l.b16 %v598
    %v670 = vunpack.c.l.b16 %v599
    %v671 = vunpack.c.l.b16 %v600
    %v672 = vunpack.c.l.b16 %v601
    %v673 = vunpack.c.l.b16 %v602
    %v674 = vunpack.c.l.b16 %v603
    %v675 = vunpack.c.l.b16 %v604
    %v676 = vunpack.c.l.b16 %v605
    %v677 = vunpack.c.l.b16 %v606
    %v678 = vpack.c.b16 %v647, %v646
    %v679 = vpack.c.b16 %v649, %v648
    %v680 = vpack.c.b16 %v651, %v650
    %v681 = vpack.c.b16 %v653, %v652
    %v682 = vpack.c.b16 %v655, %v654
    %v683 = vpack.c.b16 %v657, %v656
    %v684 = vpack.c.b16 %v659, %v658
    %v685 = vpack.c.b16 %v661, %v660
    %v686 = vpack.c.b16 %v663, %v662
    %v687 = vpack.c.b16 %v665, %v664
    %v688 = vpack.c.b16 %v667, %v666
    %v689 = vpack.c.b16 %v669, %v668
    %v690 = vpack.c.b16 %v671, %v670
    %v691 = vpack.c.b16 %v673, %v672
    %v692 = vpack.c.b16 %v675, %v674
    %v693 = vpack.c.b16 %v677, %v676
    %710 = vmatprep.subr.bf16.mxu0 0
    %711 = vmatpush1.bf16.msra.mxu0 %v685
    %712 = vmatprep.subr.bf16.mxu0 0
    %713 = vmatpush1.bf16.msra.mxu0 %v684
    %714 = vmatprep.subr.bf16.mxu0 0
    %715 = vmatpush1.bf16.msra.mxu0 %v683
    %716 = vmatprep.subr.bf16.mxu0 0
    %717 = vmatpush1.bf16.msra.mxu0 %v682
    %718 = vmatprep.subr.bf16.mxu0 0
    %719 = vmatpush1.bf16.msra.mxu0 %v681
    %720 = vmatprep.subr.bf16.mxu0 0
    %721 = vmatpush1.bf16.msra.mxu0 %v680
    %722 = vmatprep.subr.bf16.mxu0 0
    %723 = vmatpush1.bf16.msra.mxu0 %v679
    %724 = vmatprep.subr.bf16.mxu0 0
    %725 = vmatpush1.bf16.msra.mxu0 %v678
    %726 = vmatprep.subr.bf16.mxu0 0
    %727 = vmatpush2.bf16.msra.mxu0 %v693
    %728 = vmatprep.subr.bf16.mxu0 0
    %729 = vmatpush2.bf16.msra.mxu0 %v692
    %730 = vmatprep.subr.bf16.mxu0 0
    %731 = vmatpush2.bf16.msra.mxu0 %v691
    %732 = vmatprep.subr.bf16.mxu0 0
    %733 = vmatpush2.bf16.msra.mxu0 %v690
    %734 = vmatprep.subr.bf16.mxu0 0
    %735 = vmatpush2.bf16.msra.mxu0 %v689
    %736 = vmatprep.subr.bf16.mxu0 0
    %737 = vmatpush2.bf16.msra.mxu0 %v688
    %738 = vmatprep.subr.bf16.mxu0 0
    %739 = vmatpush2.bf16.msra.mxu0 %v687
    %740 = vmatprep.subr.bf16.mxu0 0
    %741 = vmatpush2.bf16.msra.mxu0 %v686
    %742 = vmatprep.mubr.bf16.mxu0 %v574
    %743 = vmatmul.mubr.bf16.gmra.mxu0 %v573
    %v744 = vpop.f32.mrf.mxu0
    %v745 = vadd.f32 %v612, %v744
    %v746 = vpop.f32.mrf.mxu0
    %v747 = vpop.f32.mrf.mxu0
    %v748 = vadd.f32 %v612, %v747
    %v749 = vpop.f32.mrf.mxu0
    %750 = vdwg.mxu0
    %v751 = vlaneseq
    %v752 = vand.u32 %v751, 127
    %vm753 = vcmp.lt.s32.totalorder %v752, 2
    %v754 = vsel %vm753, %v745, -inf
    %v755 = vsel %vm753, %v748, -inf
    %756 = vmax.xlane.f32.xlu0 %v754
    %v757 = vpop.xlane.xlu0 %756
    %758 = vmax.xlane.f32.xlu0 %v755
    %v759 = vpop.xlane.xlu0 %758
    %v760 = vsub.f32 %v754, %v757
    %v761 = vsub.f32 %v755, %v759
    %v762 = vmul.f32 %v760, 1.442695
    %v763 = vpow.pop %v762
    %v764 = vmul.f32 %v761, 1.442695
    %v765 = vpow.pop %v764
    %766 = vadd.xlane.f32.xlu0 %v763
    %v767 = vpop.xlane.xlu0 %766
    %768 = vadd.xlane.f32.xlu0 %v765
    %v769 = vpop.xlane.xlu0 %768
    %v770 = vrcp.pop %v767
    %v771 = vrcp.pop %v769
    %v772 = vmul.f32 %v763, %v770
    %v773 = vmul.f32 %v765, %v771
    %v774 = vpack.c.bf16 %v773, %v772
    %v776 = vcombine.high %v774, %v774
    %v778 = vunpack.c.l.s4 1966171168
    %v779 = vunpack.c.0.s8 %v778
    %v780 = vlaneseq
    %v781 = vshrl.u32 %v780, 7
    %v782 = vsub.s32 %v779, %v781
    %v783 = vrot.slane %v774, %v782
    %v785 = vunpack.c.l.s4 1966171168
    %v786 = vunpack.c.0.s8 %v785
    %v787 = vlaneseq
    %v788 = vshrl.u32 %v787, 7
    %v789 = vsub.s32 %v786, %v788
    %v790 = vrot.slane %v776, %v789
    %v791 = vcombine.high %v783, %v783
    %v792 = vcombine.high %v790, %v790
    %v794 = vunpack.c.l.s4 1966171168
    %v795 = vunpack.c.0.s8 %v794
    %v796 = vlaneseq
    %v797 = vshrl.u32 %v796, 7
    %v798 = vsub.s32 %v795, %v797
    %v799 = vrot.slane %v783, %v798
    %v801 = vunpack.c.l.s4 1966171168
    %v802 = vunpack.c.0.s8 %v801
    %v803 = vlaneseq
    %v804 = vshrl.u32 %v803, 7
    %v805 = vsub.s32 %v802, %v804
    %v806 = vrot.slane %v790, %v805
    %v808 = vunpack.c.l.s4 1966171168
    %v809 = vunpack.c.0.s8 %v808
    %v810 = vlaneseq
    %v811 = vshrl.u32 %v810, 7
    %v812 = vsub.s32 %v809, %v811
    %v813 = vrot.slane %v791, %v812
    %v815 = vunpack.c.l.s4 1966171168
    %v816 = vunpack.c.0.s8 %v815
    %v817 = vlaneseq
    %v818 = vshrl.u32 %v817, 7
    %v819 = vsub.s32 %v816, %v818
    %v820 = vrot.slane %v792, %v819
    %v821 = vcombine.high %v799, %v799
    %v822 = vcombine.high %v806, %v806
    %v823 = vcombine.high %v813, %v813
    %v824 = vcombine.high %v820, %v820
    %833 = vst [vmem:[#allocation10] sm:$0x1] %v799
    %834 = vst [vmem:[#allocation10 + $0x1] sm:$0x1] %v813
    %835 = vst [vmem:[#allocation10 + $0x2] sm:$0x1] %v821
    %836 = vst [vmem:[#allocation10 + $0x3] sm:$0x1] %v823
    %837 = vst [vmem:[#allocation10 + $0x4] sm:$0x1] %v806
    %838 = vst [vmem:[#allocation10 + $0x5] sm:$0x1] %v820
    %839 = vst [vmem:[#allocation10 + $0x6] sm:$0x1] %v822
    %840 = vst [vmem:[#allocation10 + $0x7] sm:$0x1] %v824
    // Predicated region
    $region46: #{tpu_custom_call.1} parent=1 // pred_check
      _
    $region47: #{tpu_custom_call.1} parent=1 // pred_check_branch
      %842 = sbr.rel (0) target = $region49
    $region48: #{tpu_custom_call.1} parent=1 // pred_region
      %s844 = ssub.s32 128, 16
      %845 = vsyncadd [#allocation4], %s844
      %s846 = sshll.u32 [#allocation10], 4
      %s847 = int_to_ptr.vmem [resolvable:$true] %s846
      %852 = dma.vmem_to_hbm [thread:$0]  %s847, 16, %s7, [#allocation4], 16, 16, 1
    $region49: #{tpu_custom_call.1} parent=1 // pred_fallthru
      _
    // Predicated region
    $region50: #{tpu_custom_call.1} parent=1 // pred_check
      _
    $region51: #{tpu_custom_call.1} parent=1 // pred_check_branch
      %854 = sbr.rel (0) target = $region53
    $region52: #{tpu_custom_call.1} parent=1 // pred_region
      %855 = dma.done [#allocation4], 128
    $region53: #{tpu_custom_call.1} parent=1 // pred_fallthru
      _
    %856 = vsyncpa [#allocation3], 1
    %857 = vsyncpa [#allocation6], 1
    %858 = vsyncpa [#allocation9], 1
    %859 = vsyncpa [#allocation4], 1

</llo_original>
